<compile_context>
chip_gen: v5e
topology: v5e:2x2
jax: 0.10.0
libtpu: 0.0.40
codegen_flags: <defaults>
</compile_context>

<pallas_src>
import functools

import jax
import jax.numpy as jnp
from jax.experimental import pallas as pl
from jax.experimental.pallas import tpu as pltpu

NEG_SLOPE = 0.01  # nn.LeakyReLU() default


def _round_up(x, m):
    return (x + m - 1) // m * m


# ----------------------------------------------------------------------------
# Kernel
# ----------------------------------------------------------------------------
def _dense_mlp_block2_kernel(x_ref, wx_ref, b1_ref, w2b_ref, b2_ref, o_ref, *,
                             hid_p):
    x = x_ref[...]                                                   # (tm, in_p)

    # Fused matmul: x @ [W1.T | W2a.T]  -> (tm, hid_p + out_p), f32 accumulate.
    xw = jnp.dot(x, wx_ref[...], preferred_element_type=jnp.float32)

    # hid_p is a multiple of 128, so these slices are lane-tile aligned.
    h_pre = xw[:, :hid_p] + b1_ref[...]                              # (tm, hid_p)
    h = jnp.where(h_pre >= 0, h_pre, NEG_SLOPE * h_pre)              # LeakyReLU

    out = xw[:, hid_p:]                                              # x @ W2a.T
    out = out + jnp.dot(h.astype(w2b_ref.dtype), w2b_ref[...],
                        preferred_element_type=jnp.float32)          # + h @ W2b.T
    out = out + b2_ref[...]
    o_ref[...] = out.astype(o_ref.dtype)


# ----------------------------------------------------------------------------
# Parameter preparation (do ONCE at parameter-load time in real use)
# ----------------------------------------------------------------------------
def prepare_params(w1, b1, w2, b2, *, compute_dtype=None):
    """w1: (hidden, in); b1: (hidden,); w2: (out, in+hidden); b2: (out,).

    Returns padded / fused weights laid out for the kernel:
      w_x  : (in_p, hid_p + out_p)  = [W1.T | W2a.T], zero-padded
      w2b  : (hid_p, out_p)         = W2b.T, zero-padded
      b1_r : (1, hid_p) f32,  b2_r : (1, out_p) f32
    Zero padding is exact: padded input lanes multiply zero activations and
    padded hidden/output lanes carry zero weights/bias and are sliced away.
    """
    hidden, in_size = w1.shape
    out_size = w2.shape[0]
    if compute_dtype is None:
        compute_dtype = w1.dtype

    in_p = _round_up(in_size, 128)
    hid_p = _round_up(hidden, 128)
    out_p = _round_up(out_size, 128)

    w1_t = jnp.zeros((in_p, hid_p), compute_dtype)
    w1_t = w1_t.at[:in_size, :hidden].set(w1.T.astype(compute_dtype))
    w2a_t = jnp.zeros((in_p, out_p), compute_dtype)
    w2a_t = w2a_t.at[:in_size, :out_size].set(w2[:, :in_size].T.astype(compute_dtype))
    w2b_t = jnp.zeros((hid_p, out_p), compute_dtype)
    w2b_t = w2b_t.at[:hidden, :out_size].set(w2[:, in_size:].T.astype(compute_dtype))

    w_x = jnp.concatenate([w1_t, w2a_t], axis=1)        # (in_p, hid_p + out_p)

    b1_r = jnp.zeros((1, hid_p), jnp.float32).at[0, :hidden].set(b1.astype(jnp.float32))
    b2_r = jnp.zeros((1, out_p), jnp.float32).at[0, :out_size].set(b2.astype(jnp.float32))

    dims = dict(in_size=in_size, hidden=hidden, out_size=out_size,
                in_p=in_p, hid_p=hid_p, out_p=out_p)
    return (w_x, w2b_t, b1_r, b2_r), dims


# ----------------------------------------------------------------------------
# Forward
# ----------------------------------------------------------------------------
def dense_mlp_block2_apply(x, params, dims, *, tm=512,
                           vmem_budget_bytes=40 * 2**20):
    """x: (B, in_size) -> (B, out_size)."""
    w_x, w2b_t, b1_r, b2_r = params
    B = x.shape[0]
    in_size, out_size = dims["in_size"], dims["out_size"]
    in_p, hid_p, out_p = dims["in_p"], dims["hid_p"], dims["out_p"]

    act_itemsize = jnp.dtype(x.dtype).itemsize
    w_itemsize = jnp.dtype(w_x.dtype).itemsize

    # ---- choose batch tile (multiple of 8) to fit a conservative VMEM budget.
    # NOTE: weights/biases have constant index_maps so they are DMA'd once, but
    # the default pipeline still reserves 2 buffers each -> count them twice.
    # TODO(synk): single-buffer resident weights (pl.Buffered(1)) once stable.
    weight_bytes = 2 * (w_x.size + w2b_t.size) * w_itemsize \
                 + 2 * (b1_r.size + b2_r.size) * 4

    def act_bytes(t):
        return (2 * t * in_p * act_itemsize        # x double-buffer
                + 2 * t * out_p * act_itemsize     # out double-buffer
                + t * (hid_p + out_p) * 4          # fused-dot result (f32)
                + t * hid_p * 4)                   # activated hidden (f32)

    tm = max(8, min(tm, _round_up(B, 8)))
    tm = _round_up(tm, 8)
    while tm > 8 and weight_bytes + act_bytes(tm) > vmem_budget_bytes:
        tm = _round_up(max(8, tm // 2), 8)

    # v7x has 2 TensorCores: make sure the parallel grid has >= 2 steps when
    # the batch is big enough to split.
    if pl.cdiv(_round_up(B, 8), tm) < 2 and B > 8:
        tm = _round_up(pl.cdiv(_round_up(B, 8), 2), 8)

    # ---- pad batch + features of x (zero rows/lanes, sliced off afterwards).
    Bp = _round_up(B, tm)
    x_p = jnp.zeros((Bp, in_p), x.dtype).at[:B, :in_size].set(x)

    grid = (Bp // tm,)
    kernel = functools.partial(_dense_mlp_block2_kernel, hid_p=hid_p)

    out_p_arr = pl.pallas_call(
        kernel,
        out_shape=jax.ShapeDtypeStruct((Bp, out_p), x.dtype),
        grid_spec=pltpu.PrefetchScalarGridSpec(
            num_scalar_prefetch=0,
            grid=grid,
            in_specs=[
                pl.BlockSpec((tm, in_p), lambda i: (i, 0)),            # x tile
                pl.BlockSpec((in_p, hid_p + out_p), lambda i: (0, 0)),  # [W1.T|W2a.T]
                pl.BlockSpec((1, hid_p), lambda i: (0, 0)),             # b1
                pl.BlockSpec((hid_p, out_p), lambda i: (0, 0)),         # W2b.T
                pl.BlockSpec((1, out_p), lambda i: (0, 0)),             # b2
            ],
            out_specs=pl.BlockSpec((tm, out_p), lambda i: (i, 0)),
        ),
        compiler_params=pltpu.CompilerParams(
            dimension_semantics=("parallel",),
            vmem_limit_bytes=64 * 1024 * 1024,
        ),
    )(x_p, w_x, b1_r, w2b_t, b2_r)

    return out_p_arr[:B, :out_size]


def dense_mlp_block2(x, w1, b1, w2, b2, *, tm=512):
    """Convenience wrapper: prep + apply.  (In real use, call prepare_params
    once at parameter-load time and reuse the result across forward calls.)"""
    params, dims = prepare_params(w1, b1, w2, b2, compute_dtype=x.dtype)
    return dense_mlp_block2_apply(x, params, dims, tm=tm)


# ----------------------------------------------------------------------------
# Reference + test
# ----------------------------------------------------------------------------
def _reference(x, w1, b1, w2, b2):
    x1 = x @ w1.T + b1
    x1 = jnp.where(x1 >= 0, x1, NEG_SLOPE * x1)
    x1_cat = jnp.concatenate([x, x1], axis=1)
    return x1_cat @ w2.T + b2


if __name__ == "__main__":
    # Small shapes consistent with the module's forward.
    batch, in_size, hidden_size, out_size = 8, 16, 32, 16

    key = jax.random.PRNGKey(0)
    k_x, k_w1, k_b1, k_w2, k_b2 = jax.random.split(key, 5)

    x = jax.random.normal(k_x, (batch, in_size), dtype=jnp.float32)
    w1 = jax.random.normal(k_w1, (hidden_size, in_size), dtype=jnp.float32) * 0.1
    b1 = jax.random.normal(k_b1, (hidden_size,), dtype=jnp.float32) * 0.1
    w2 = jax.random.normal(k_w2, (out_size, in_size + hidden_size), dtype=jnp.float32) * 0.1
    b2 = jax.random.normal(k_b2, (out_size,), dtype=jnp.float32) * 0.1

    out = dense_mlp_block2(x, w1, b1, w2, b2)
    out = jax.block_until_ready(out)

    ref = _reference(x, w1, b1, w2, b2)
    assert out.shape == (batch, out_size)
    assert jnp.allclose(out, ref, atol=1e-5, rtol=1e-5), "mismatch vs reference"

    print("KERNEL_OK")
</pallas_src>

<mosaic_0001>
module attributes {stable_mosaic.version = 11 : i64} {
  func.func @_dense_mlp_block2_kernel(%arg0: i32, %arg1: memref<8x128xf32, #tpu.memory_space<vmem>>, %arg2: memref<128x256xf32, #tpu.memory_space<vmem>>, %arg3: memref<1x128xf32, #tpu.memory_space<vmem>>, %arg4: memref<128x128xf32, #tpu.memory_space<vmem>>, %arg5: memref<1x128xf32, #tpu.memory_space<vmem>>, %arg6: memref<8x128xf32, #tpu.memory_space<vmem>>) attributes {dimension_semantics = [#tpu.dimension_semantics<parallel>], iteration_bounds = array<i64: 1>, scalar_prefetch = 0 : i64, scratch_operands = 0 : i64, tpu.core_type = #tpu.core_type<tc>, window_params = [{transform_indices = @transform_0, window_bounds = array<i64: 8, 128>}, {pipeline_mode = #tpu.pipeline_mode<synchronous>, transform_indices = @transform_1, window_bounds = array<i64: 128, 256>}, {pipeline_mode = #tpu.pipeline_mode<synchronous>, transform_indices = @transform_2, window_bounds = array<i64: 1, 128>}, {pipeline_mode = #tpu.pipeline_mode<synchronous>, transform_indices = @transform_3, window_bounds = array<i64: 128, 128>}, {pipeline_mode = #tpu.pipeline_mode<synchronous>, transform_indices = @transform_4, window_bounds = array<i64: 1, 128>}, {transform_indices = @transform_5, window_bounds = array<i64: 8, 128>}]} {
    %c0 = arith.constant 0 : index
    %c0_0 = arith.constant 0 : index
    %0 = vector.load %arg1[%c0, %c0_0] : memref<8x128xf32, #tpu.memory_space<vmem>>, vector<8x128xf32>
    %c0_1 = arith.constant 0 : index
    %c0_2 = arith.constant 0 : index
    %1 = vector.load %arg2[%c0_1, %c0_2] : memref<128x256xf32, #tpu.memory_space<vmem>>, vector<128x256xf32>
    %cst = arith.constant dense<0.000000e+00> : vector<8x256xf32>
    %2 = tpu.matmul %0, %1, %cst {dimension_numbers = #tpu.dot_dimension_numbers<[1], [0], [0], [1], [0, 0, 1, 1], [], []>} : vector<8x128xf32>, vector<128x256xf32>, vector<8x256xf32> -> vector<8x256xf32>
    %3 = vector.extract_strided_slice %2 {offsets = [0, 0], sizes = [8, 128], strides = [1, 1]} : vector<8x256xf32> to vector<8x128xf32>
    %c0_3 = arith.constant 0 : index
    %c0_4 = arith.constant 0 : index
    %4 = vector.load %arg3[%c0_3, %c0_4] : memref<1x128xf32, #tpu.memory_space<vmem>>, vector<1x128xf32>
    %5 = vector.broadcast %4 : vector<1x128xf32> to vector<8x128xf32>
    %6 = arith.addf %3, %5 : vector<8x128xf32>
    %cst_5 = arith.constant 0.000000e+00 : f32
    %7 = vector.broadcast %cst_5 : f32 to vector<8x128xf32>
    %8 = arith.cmpf oge, %6, %7 : vector<8x128xf32>
    %cst_6 = arith.constant 0.00999999977 : f32
    %9 = vector.broadcast %cst_6 : f32 to vector<8x128xf32>
    %10 = arith.mulf %9, %6 : vector<8x128xf32>
    %11 = arith.select %8, %6, %10 : vector<8x128xi1>, vector<8x128xf32>
    %12 = vector.extract_strided_slice %2 {offsets = [0, 128], sizes = [8, 128], strides = [1, 1]} : vector<8x256xf32> to vector<8x128xf32>
    %c0_7 = arith.constant 0 : index
    %c0_8 = arith.constant 0 : index
    %13 = vector.load %arg4[%c0_7, %c0_8] : memref<128x128xf32, #tpu.memory_space<vmem>>, vector<128x128xf32>
    %cst_9 = arith.constant dense<0.000000e+00> : vector<8x128xf32>
    %14 = tpu.matmul %11, %13, %cst_9 {dimension_numbers = #tpu.dot_dimension_numbers<[1], [0], [0], [1], [0, 0, 1, 1], [], []>} : vector<8x128xf32>, vector<128x128xf32>, vector<8x128xf32> -> vector<8x128xf32>
    %15 = arith.addf %12, %14 : vector<8x128xf32>
    %c0_10 = arith.constant 0 : index
    %c0_11 = arith.constant 0 : index
    %16 = vector.load %arg5[%c0_10, %c0_11] : memref<1x128xf32, #tpu.memory_space<vmem>>, vector<1x128xf32>
    %17 = vector.broadcast %16 : vector<1x128xf32> to vector<8x128xf32>
    %18 = arith.addf %15, %17 : vector<8x128xf32>
    %c0_12 = arith.constant 0 : index
    %c0_13 = arith.constant 0 : index
    %19 = vector.load %arg6[%c0_12, %c0_13] : memref<8x128xf32, #tpu.memory_space<vmem>>, vector<8x128xf32>
    tpu.vector_store %arg6[%c0_12, %c0_13], %18 {strides = array<i32>} : memref<8x128xf32, #tpu.memory_space<vmem>>, vector<8x128xf32>,
    return
  }
  func.func @transform_0(%arg0: i32) -> (i32, i32) {
    %c0_i32 = arith.constant 0 : i32
    %c0_i32_0 = arith.constant 0 : i32
    return %arg0, %c0_i32 : i32, i32
  }
  func.func @transform_1(%arg0: i32) -> (i32, i32) {
    %c0_i32 = arith.constant 0 : i32
    %c0_i32_0 = arith.constant 0 : i32
    %c0_i32_1 = arith.constant 0 : i32
    return %c0_i32, %c0_i32_0 : i32, i32
  }
  func.func @transform_2(%arg0: i32) -> (i32, i32) {
    %c0_i32 = arith.constant 0 : i32
    %c0_i32_0 = arith.constant 0 : i32
    %c0_i32_1 = arith.constant 0 : i32
    return %c0_i32, %c0_i32_0 : i32, i32
  }
  func.func @transform_3(%arg0: i32) -> (i32, i32) {
    %c0_i32 = arith.constant 0 : i32
    %c0_i32_0 = arith.constant 0 : i32
    %c0_i32_1 = arith.constant 0 : i32
    return %c0_i32, %c0_i32_0 : i32, i32
  }
  func.func @transform_4(%arg0: i32) -> (i32, i32) {
    %c0_i32 = arith.constant 0 : i32
    %c0_i32_0 = arith.constant 0 : i32
    %c0_i32_1 = arith.constant 0 : i32
    return %c0_i32, %c0_i32_0 : i32, i32
  }
  func.func @transform_5(%arg0: i32) -> (i32, i32) {
    %c0_i32 = arith.constant 0 : i32
    %c0_i32_0 = arith.constant 0 : i32
    return %arg0, %c0_i32 : i32, i32
  }
}

</mosaic_0001>

<llo_original>
// kernel: tpu_custom_call.1
$region0: #{tpu_custom_call.1}
  #allocation0 [shape = 'u32[]', space=smem, size = 0x4, offset = 0x4, fixed_abs, tag = 'smem constant byte address 0x4 - core index']
  #allocation1 [shape = 'u32[72,128]{1,0:T(1,128)}', space=vmem, size = 0x9000, scoped, tag = 'internal scratch']
  %s0 = inlined_call_operand.hbm [shape: f32[8,128], index: 0, kind: input, shape index: {}]
  %s1 = inlined_call_operand.hbm [shape: f32[128,256], index: 1, kind: input, shape index: {}]
  %s2 = inlined_call_operand.vmem [shape: f32[1,128], index: 2, kind: input, shape index: {}]
  %s3 = inlined_call_operand.hbm [shape: f32[128,128], index: 3, kind: input, shape index: {}]
  %s4 = inlined_call_operand.vmem [shape: f32[1,128], index: 4, kind: input, shape index: {}]
  %s5 = inlined_call_operand.hbm [shape: f32[8,128], index: 5, kind: output, shape index: {}]
  %s6 = sld [smem:[#allocation0]]
  $region42: #{tpu_custom_call.1} parent=0
    _
  %s8 = ssub.s32 1, %s6
  %s9 = scalar_select 0, %s8, %s6
  $region1: #{tpu_custom_call.1} parent=0
    #allocation2 [shape = 'u8[4096]{0}', space=vmem, size = 0x1000, scoped, tag = 'input window, operand 0, single buffered']
    #allocation3 [shape = 's32[1]{0}', space=sflag, size = 0x4, scoped, tag = 'scoped memory for tpu_custom_call.1']
    #allocation4 [shape = 's32[1]{0}', space=sflag, size = 0x4, scoped, tag = 'scoped memory for tpu_custom_call.1']
    #allocation5 [shape = 'u8[131072]{0}', space=vmem, size = 0x20000, scoped, tag = 'input window, operand 1, single buffered']
    #allocation6 [shape = 's32[1]{0}', space=sflag, size = 0x4, scoped, tag = 'scoped memory for tpu_custom_call.1']
    #allocation7 [shape = 'u8[65536]{0}', space=vmem, size = 0x10000, scoped, tag = 'input window, operand 3, single buffered']
    #allocation8 [shape = 'u8[4096]{0}', space=vmem, size = 0x1000, scoped, tag = 'output window, operand 0, single buffered']
    %10 = vsyncpa [#allocation3], 0
    %11 = vsyncpa [#allocation6], 0
    %12 = vsyncpa [#allocation4], 0
    // Predicated region
    $region2: #{tpu_custom_call.1} parent=1 // pred_check
      _
    $region3: #{tpu_custom_call.1} parent=1 // pred_check_branch
      %14 = sbr.rel (0) target = $region5
    $region4: #{tpu_custom_call.1} parent=1 // pred_region
      %16 = vsyncadd [#allocation3], 0
      %s18 = sshll.u32 %s0, 4
      %s19 = int_to_ptr.hbm [resolvable:$true] %s18
      %s20 = sshll.u32 [#allocation2], 4
      %s21 = int_to_ptr.vmem [resolvable:$true] %s20
      %23 = dma.hbm_to_vmem [thread:$0]  %s19, 128, %s21, [#allocation3]
    $region5: #{tpu_custom_call.1} parent=1 // pred_fallthru
      _
    // Predicated region
    $region6: #{tpu_custom_call.1} parent=1 // pred_check
      _
    $region7: #{tpu_custom_call.1} parent=1 // pred_check_branch
      %25 = sbr.rel (0) target = $region9
    $region8: #{tpu_custom_call.1} parent=1 // pred_region
      %27 = vsyncadd [#allocation6], 0
      %s28 = sshll.u32 %s1, 4
      %s29 = int_to_ptr.hbm [resolvable:$true] %s28
      %s30 = sshll.u32 [#allocation5], 4
      %s31 = int_to_ptr.vmem [resolvable:$true] %s30
      %36 = dma.hbm_to_vmem [thread:$0]  %s29, 4096, %s31, [#allocation6], 256, 256, 16
    $region9: #{tpu_custom_call.1} parent=1 // pred_fallthru
      _
    // Predicated region
    $region10: #{tpu_custom_call.1} parent=1 // pred_check
      _
    $region11: #{tpu_custom_call.1} parent=1 // pred_check_branch
      %38 = sbr.rel (0) target = $region13
    $region12: #{tpu_custom_call.1} parent=1 // pred_region
      _
    $region13: #{tpu_custom_call.1} parent=1 // pred_fallthru
      _
    // Predicated region
    $region14: #{tpu_custom_call.1} parent=1 // pred_check
      _
    $region15: #{tpu_custom_call.1} parent=1 // pred_check_branch
      %40 = sbr.rel (0) target = $region17
    $region16: #{tpu_custom_call.1} parent=1 // pred_region
      %42 = vsyncadd [#allocation6], 0
      %s43 = sshll.u32 %s3, 4
      %s44 = int_to_ptr.hbm [resolvable:$true] %s43
      %s45 = sshll.u32 [#allocation7], 4
      %s46 = int_to_ptr.vmem [resolvable:$true] %s45
      %51 = dma.hbm_to_vmem [thread:$0]  %s44, 2048, %s46, [#allocation6], 128, 128, 8
    $region17: #{tpu_custom_call.1} parent=1 // pred_fallthru
      _
    // Predicated region
    $region18: #{tpu_custom_call.1} parent=1 // pred_check
      _
    $region19: #{tpu_custom_call.1} parent=1 // pred_check_branch
      %53 = sbr.rel (0) target = $region21
    $region20: #{tpu_custom_call.1} parent=1 // pred_region
      _
    $region21: #{tpu_custom_call.1} parent=1 // pred_fallthru
      _
    // Predicated region
    $region22: #{tpu_custom_call.1} parent=1 // pred_check
      _
    $region23: #{tpu_custom_call.1} parent=1 // pred_check_branch
      %55 = sbr.rel (0) target = $region25
    $region24: #{tpu_custom_call.1} parent=1 // pred_region
      %57 = dma.done [#allocation3], 128
    $region25: #{tpu_custom_call.1} parent=1 // pred_fallthru
      _
    // Predicated region
    $region26: #{tpu_custom_call.1} parent=1 // pred_check
      _
    $region27: #{tpu_custom_call.1} parent=1 // pred_check_branch
      %59 = sbr.rel (0) target = $region29
    $region28: #{tpu_custom_call.1} parent=1 // pred_region
      %61 = dma.done [#allocation6], 4096
    $region29: #{tpu_custom_call.1} parent=1 // pred_fallthru
      _
    // Predicated region
    $region30: #{tpu_custom_call.1} parent=1 // pred_check
      _
    $region31: #{tpu_custom_call.1} parent=1 // pred_check_branch
      %63 = sbr.rel (0) target = $region33
    $region32: #{tpu_custom_call.1} parent=1 // pred_region
      %65 = dma.done [#allocation6], 2048
    $region33: #{tpu_custom_call.1} parent=1 // pred_fallthru
      _
    %v66 = vld [vmem:[#allocation2] sm:$0xff]
    %v67 = vld [vmem:[#allocation5] sm:$0xff]
    %v68 = vld [vmem:[#allocation5 + $0x8] sm:$0xff]
    %v69 = vld [vmem:[#allocation5 + $0x10] sm:$0xff]
    %v70 = vld [vmem:[#allocation5 + $0x18] sm:$0xff]
    %v71 = vld [vmem:[#allocation5 + $0x20] sm:$0xff]
    %v72 = vld [vmem:[#allocation5 + $0x28] sm:$0xff]
    %v73 = vld [vmem:[#allocation5 + $0x30] sm:$0xff]
    %v74 = vld [vmem:[#allocation5 + $0x38] sm:$0xff]
    %v75 = vld [vmem:[#allocation5 + $0x40] sm:$0xff]
    %v76 = vld [vmem:[#allocation5 + $0x48] sm:$0xff]
    %v77 = vld [vmem:[#allocation5 + $0x50] sm:$0xff]
    %v78 = vld [vmem:[#allocation5 + $0x58] sm:$0xff]
    %v79 = vld [vmem:[#allocation5 + $0x60] sm:$0xff]
    %v80 = vld [vmem:[#allocation5 + $0x68] sm:$0xff]
    %v81 = vld [vmem:[#allocation5 + $0x70] sm:$0xff]
    %v82 = vld [vmem:[#allocation5 + $0x78] sm:$0xff]
    %v83 = vld [vmem:[#allocation5 + $0x80] sm:$0xff]
    %v84 = vld [vmem:[#allocation5 + $0x88] sm:$0xff]
    %v85 = vld [vmem:[#allocation5 + $0x90] sm:$0xff]
    %v86 = vld [vmem:[#allocation5 + $0x98] sm:$0xff]
    %v87 = vld [vmem:[#allocation5 + $0xa0] sm:$0xff]
    %v88 = vld [vmem:[#allocation5 + $0xa8] sm:$0xff]
    %v89 = vld [vmem:[#allocation5 + $0xb0] sm:$0xff]
    %v90 = vld [vmem:[#allocation5 + $0xb8] sm:$0xff]
    %v91 = vld [vmem:[#allocation5 + $0xc0] sm:$0xff]
    %v92 = vld [vmem:[#allocation5 + $0xc8] sm:$0xff]
    %v93 = vld [vmem:[#allocation5 + $0xd0] sm:$0xff]
    %v94 = vld [vmem:[#allocation5 + $0xd8] sm:$0xff]
    %v95 = vld [vmem:[#allocation5 + $0xe0] sm:$0xff]
    %v96 = vld [vmem:[#allocation5 + $0xe8] sm:$0xff]
    %v97 = vld [vmem:[#allocation5 + $0xf0] sm:$0xff]
    %v98 = vld [vmem:[#allocation5 + $0xf8] sm:$0xff]
    %99 = vmatpush.msra.mxu0 %v97
    %100 = vmatpush.msra.mxu0 %v95
    %101 = vmatpush.msra.mxu0 %v93
    %102 = vmatpush.msra.mxu0 %v91
    %103 = vmatpush.msra.mxu0 %v89
    %104 = vmatpush.msra.mxu0 %v87
    %105 = vmatpush.msra.mxu0 %v85
    %106 = vmatpush.msra.mxu0 %v83
    %107 = vmatpush.msra.mxu0 %v81
    %108 = vmatpush.msra.mxu0 %v79
    %109 = vmatpush.msra.mxu0 %v77
    %110 = vmatpush.msra.mxu0 %v75
    %111 = vmatpush.msra.mxu0 %v73
    %112 = vmatpush.msra.mxu0 %v71
    %113 = vmatpush.msra.mxu0 %v69
    %114 = vmatpush.msra.mxu0 %v67
    %115 = vmatmul.f32.gmra.mxu0 %v66
    %v116 = vpop.f32.mrf.mxu0
    %v117 = vadd.f32 0.0, %v116
    %118 = vdwg.mxu0
    %119 = vmatpush.msra.mxu0 %v98
    %120 = vmatpush.msra.mxu0 %v96
    %121 = vmatpush.msra.mxu0 %v94
    %122 = vmatpush.msra.mxu0 %v92
    %123 = vmatpush.msra.mxu0 %v90
    %124 = vmatpush.msra.mxu0 %v88
    %125 = vmatpush.msra.mxu0 %v86
    %126 = vmatpush.msra.mxu0 %v84
    %127 = vmatpush.msra.mxu0 %v82
    %128 = vmatpush.msra.mxu0 %v80
    %129 = vmatpush.msra.mxu0 %v78
    %130 = vmatpush.msra.mxu0 %v76
    %131 = vmatpush.msra.mxu0 %v74
    %132 = vmatpush.msra.mxu0 %v72
    %133 = vmatpush.msra.mxu0 %v70
    %134 = vmatpush.msra.mxu0 %v68
    %135 = vmatmul.f32.gmra.mxu0 %v66
    %v136 = vpop.f32.mrf.mxu0
    %v137 = vadd.f32 0.0, %v136
    %138 = vdwg.mxu0
    %v139 = vld [vmem:[%s2] sm:$0x1]
    %v141 = vperm.slane %v139, 0
    %v143 = vadd.f32 %v117, %v141
    %vm144 = vcmp.ge.f32.partialorder %v143, 0.0
    %v145 = vmul.f32 %v143, 0.01
    %v146 = vsel %vm144, %v143, %v145
    %v147 = vld [vmem:[#allocation7] sm:$0xff]
    %v148 = vld [vmem:[#allocation7 + $0x8] sm:$0xff]
    %v149 = vld [vmem:[#allocation7 + $0x10] sm:$0xff]
    %v150 = vld [vmem:[#allocation7 + $0x18] sm:$0xff]
    %v151 = vld [vmem:[#allocation7 + $0x20] sm:$0xff]
    %v152 = vld [vmem:[#allocation7 + $0x28] sm:$0xff]
    %v153 = vld [vmem:[#allocation7 + $0x30] sm:$0xff]
    %v154 = vld [vmem:[#allocation7 + $0x38] sm:$0xff]
    %v155 = vld [vmem:[#allocation7 + $0x40] sm:$0xff]
    %v156 = vld [vmem:[#allocation7 + $0x48] sm:$0xff]
    %v157 = vld [vmem:[#allocation7 + $0x50] sm:$0xff]
    %v158 = vld [vmem:[#allocation7 + $0x58] sm:$0xff]
    %v159 = vld [vmem:[#allocation7 + $0x60] sm:$0xff]
    %v160 = vld [vmem:[#allocation7 + $0x68] sm:$0xff]
    %v161 = vld [vmem:[#allocation7 + $0x70] sm:$0xff]
    %v162 = vld [vmem:[#allocation7 + $0x78] sm:$0xff]
    %163 = vmatpush.msra.mxu0 %v162
    %164 = vmatpush.msra.mxu0 %v161
    %165 = vmatpush.msra.mxu0 %v160
    %166 = vmatpush.msra.mxu0 %v159
    %167 = vmatpush.msra.mxu0 %v158
    %168 = vmatpush.msra.mxu0 %v157
    %169 = vmatpush.msra.mxu0 %v156
    %170 = vmatpush.msra.mxu0 %v155
    %171 = vmatpush.msra.mxu0 %v154
    %172 = vmatpush.msra.mxu0 %v153
    %173 = vmatpush.msra.mxu0 %v152
    %174 = vmatpush.msra.mxu0 %v151
    %175 = vmatpush.msra.mxu0 %v150
    %176 = vmatpush.msra.mxu0 %v149
    %177 = vmatpush.msra.mxu0 %v148
    %178 = vmatpush.msra.mxu0 %v147
    %179 = vmatmul.f32.gmra.mxu0 %v146
    %v180 = vpop.f32.mrf.mxu0
    %v181 = vadd.f32 0.0, %v180
    %182 = vdwg.mxu0
    %v183 = vadd.f32 %v137, %v181
    %v184 = vld [vmem:[%s4] sm:$0x1]
    %v186 = vperm.slane %v184, 0
    %v188 = vadd.f32 %v183, %v186
    %189 = vst [vmem:[#allocation8] sm:$0xff] %v188
    // Predicated region
    $region34: #{tpu_custom_call.1} parent=1 // pred_check
      _
    $region35: #{tpu_custom_call.1} parent=1 // pred_check_branch
      %191 = sbr.rel (0) target = $region37
    $region36: #{tpu_custom_call.1} parent=1 // pred_region
      %193 = vsyncadd [#allocation4], 0
      %s195 = sshll.u32 [#allocation8], 4
      %s196 = int_to_ptr.vmem [resolvable:$true] %s195
      %s197 = sshll.u32 %s5, 4
      %s198 = int_to_ptr.hbm [resolvable:$true] %s197
      %200 = dma.vmem_to_hbm [thread:$0]  %s196, 128, %s198, [#allocation4]
    $region37: #{tpu_custom_call.1} parent=1 // pred_fallthru
      _
    // Predicated region
    $region38: #{tpu_custom_call.1} parent=1 // pred_check
      _
    $region39: #{tpu_custom_call.1} parent=1 // pred_check_branch
      %202 = sbr.rel (0) target = $region41
    $region40: #{tpu_custom_call.1} parent=1 // pred_region
      %204 = dma.done [#allocation4], 128
    $region41: #{tpu_custom_call.1} parent=1 // pred_fallthru
      _
    %205 = vsyncpa [#allocation3], 1
    %206 = vsyncpa [#allocation6], 1
    %207 = vsyncpa [#allocation4], 1

</llo_original>
